<compile_context>
chip_gen: v7x
topology: tpu7x:2x2x1
jax: 0.10.0
libtpu: 0.0.40
codegen_flags: <defaults>
</compile_context>

<pallas_src>
import jax
import jax.numpy as jnp
from jax import lax
from jax.experimental import pallas as pl
from jax.experimental.pallas import tpu as pltpu


def _round_up(v, m):
    return ((v + m - 1) // m) * m


def _make_readout_kernel(op, mask_pad_rows, node_block):
    """Kernel factory. All arguments are trace-time Python constants."""
    if op not in ("sum", "mean", "max", "min"):
        raise ValueError(f"unsupported readout op: {op}")

    def kernel(nn_ref, x_ref, o_ref, acc_ref):
        # nn_ref : VMEM (GB, 1) int32          node count per graph
        # x_ref  : VMEM (GB, node_block, F)    padded node features (pad rows are 0)
        # o_ref  : VMEM (GB, F)                pooled output row per graph
        # acc_ref: VMEM (GB, F) float32        running reduction over node chunks
        k = pl.program_id(1)
        n = nn_ref[...]                                    # (GB, 1) int32
        gb, nb, _ = x_ref.shape

        need_mask = (op in ("max", "min")) or mask_pad_rows
        if need_mask:
            node_ids = k * node_block + lax.broadcasted_iota(jnp.int32, (gb, nb, 1), 1)
            valid = node_ids < n[:, :, None]               # (GB, nb, 1), bcast over F

        if op in ("sum", "mean"):
            x = x_ref[...].astype(jnp.float32)
            if mask_pad_rows:                               # only when a node chunk can
                x = jnp.where(valid, x, 0.0)                # read stale rows past NMAX
            part = jnp.sum(x, axis=1)                       # (GB, F) f32
        else:
            sentinel = float("-inf") if op == "max" else float("inf")
            xm = jnp.where(valid, x_ref[...], sentinel)     # select in input dtype
            part = (jnp.max(xm, axis=1) if op == "max"
                    else jnp.min(xm, axis=1)).astype(jnp.float32)

        @pl.when(k == 0)
        def _init():
            acc_ref[...] = part

        @pl.when(k > 0)
        def _combine():
            if op in ("sum", "mean"):
                acc_ref[...] = acc_ref[...] + part
            elif op == "max":
                acc_ref[...] = jnp.maximum(acc_ref[...], part)
            else:
                acc_ref[...] = jnp.minimum(acc_ref[...], part)

        @pl.when(k == pl.num_programs(1) - 1)
        def _finalize():
            acc = acc_ref[...]
            if op == "mean":
                nf = jnp.maximum(n, 1).astype(jnp.float32)           # (GB, 1)
                acc = acc * pl.reciprocal(nf, approx=False)
            if op != "sum":
                acc = jnp.where(n > 0, acc, 0.0)                     # empty graph -> 0
            o_ref[...] = acc.astype(o_ref.dtype)

    return kernel


def basic_readout(x_padded, n_nodes, op, *, graphs_per_block=None, node_block=None):
    """Per-graph readout (dgl.readout_nodes equivalent on a dense packing).

    x_padded: [B, NMAX, F] float; rows >= n_nodes[b] MUST be exact zeros.
    n_nodes : [B] integer node counts.
    op      : 'sum' | 'mean' | 'max' | 'min'
    returns : [B, F] float32
    """
    B, NMAX, F = x_padded.shape
    itemsize = x_padded.dtype.itemsize

    # Lane-dense feature axis (one-time pad; no-op when F % 128 == 0).
    F_pad = _round_up(F, 128)
    if F_pad != F:
        x_padded = jnp.pad(x_padded, ((0, 0), (0, 0), (0, F_pad - F)))

    budget = 8 << 20  # target bytes for one (GB, node_block, F) input block

    # Node chunking only when 8 graphs with the full node axis would not fit.
    if node_block is None:
        if 8 * NMAX * F_pad * itemsize <= budget:
            node_block = NMAX
        else:
            node_block = max(8, (budget // (8 * F_pad * itemsize)) // 8 * 8)
    node_block = int(min(node_block, NMAX))
    if node_block != NMAX:
        node_block = max(8, (node_block // 8) * 8)        # (8,128) tiling on the block
    num_node_chunks = pl.cdiv(NMAX, node_block)
    mask_pad_rows = (NMAX % node_block) != 0              # last chunk may read stale rows

    # Graphs per block: fill the budget, multiple of 8, no bigger than the batch.
    if graphs_per_block is None:
        chunk_bytes = node_block * F_pad * itemsize
        graphs_per_block = max(8, (budget // chunk_bytes) // 8 * 8)
    GB = int(min(_round_up(int(graphs_per_block), 8), _round_up(B, 8)))
    num_graph_blocks = pl.cdiv(B, GB)

    # Only n_nodes is padded (tiny); x_padded and the output use Pallas partial
    # blocks for the ragged tail — no full-tensor HBM pad copy.
    B_pad = num_graph_blocks * GB
    nn2d = jnp.zeros((B_pad, 1), jnp.int32).at[:B, 0].set(n_nodes.astype(jnp.int32))

    x_block_bytes = GB * node_block * F_pad * itemsize
    out_block_bytes = GB * F_pad * 4
    vmem_need = 2 * x_block_bytes + 3 * out_block_bytes + 4 * GB * 4 + (2 << 20)
    vmem_limit = int(min(max(vmem_need, 16 << 20), 30 << 20))   # safe on v5e/v6e/v7x

    cost = pl.CostEstimate(
        flops=int(B) * int(NMAX) * int(F_pad),
        transcendentals=0,
        bytes_accessed=int(B * NMAX * F_pad * itemsize + B * F_pad * 4 + B_pad * 4),
    )

    out = pl.pallas_call(
        _make_readout_kernel(op, mask_pad_rows, node_block),
        out_shape=jax.ShapeDtypeStruct((B, F_pad), jnp.float32),
        grid=(num_graph_blocks, num_node_chunks),
        in_specs=[
            pl.BlockSpec((GB, 1), lambda i, k: (i, 0)),
            pl.BlockSpec((GB, node_block, F_pad), lambda i, k: (i, k, 0)),
        ],
        out_specs=pl.BlockSpec((GB, F_pad), lambda i, k: (i, 0)),
        scratch_shapes=[pltpu.VMEM((GB, F_pad), jnp.float32)],
        compiler_params=pltpu.CompilerParams(
            # Graph axis is embarrassingly parallel (v7x megacore can shard it);
            # node-chunk axis carries the accumulator -> "arbitrary".
            dimension_semantics=("parallel", "arbitrary"),
            vmem_limit_bytes=vmem_limit,
        ),
        cost_estimate=cost,
    )(nn2d, x_padded)

    return out if F_pad == F else out[:, :F]


def _reference(x_padded, n_nodes, op):
    """Pure-JAX reference mirroring dgl.readout_nodes on the padded layout."""
    B, NMAX, F = x_padded.shape
    valid = jnp.arange(NMAX)[None, :, None] < n_nodes[:, None, None]
    nf = n_nodes.astype(jnp.float32)[:, None]
    if op == "sum":
        return jnp.sum(jnp.where(valid, x_padded, 0.0), axis=1)
    if op == "mean":
        s = jnp.sum(jnp.where(valid, x_padded, 0.0), axis=1)
        return jnp.where(nf > 0, s / jnp.maximum(nf, 1.0), 0.0)
    if op == "max":
        m = jnp.max(jnp.where(valid, x_padded, -jnp.inf), axis=1)
        return jnp.where(nf > 0, m, 0.0)
    if op == "min":
        m = jnp.min(jnp.where(valid, x_padded, jnp.inf), axis=1)
        return jnp.where(nf > 0, m, 0.0)
    raise ValueError(op)


if __name__ == "__main__":
    key = jax.random.PRNGKey(0)

    def make_inputs(k, B, NMAX, F):
        k_sizes, k_feat = jax.random.split(k)
        n_nodes = jax.random.randint(k_sizes, (B,), 1, NMAX + 1).astype(jnp.int32)
        n_nodes = n_nodes.at[3].set(0)            # exercise the empty-graph path
        x_full = jax.random.normal(k_feat, (B, NMAX, F), dtype=jnp.float32)
        # Host-side packing contract: padded rows are exact zeros.
        row_ids = jnp.arange(NMAX)[None, :, None]
        x_padded = jnp.where(row_ids < n_nodes[:, None, None], x_full, 0.0)
        return x_padded, n_nodes

    configs = [
        # auto tiling: single block, single node chunk
        dict(B=16, NMAX=16, F=128, kwargs={}),
        # ragged tail: partial graph block + node chunking + stale-row masking
        dict(B=10, NMAX=20, F=128, kwargs=dict(graphs_per_block=8, node_block=8)),
    ]
    for ci, cfg in enumerate(configs):
        key, sub = jax.random.split(key)
        x_padded, n_nodes = make_inputs(sub, cfg["B"], cfg["NMAX"], cfg["F"])
        for op in ("sum", "mean", "max", "min"):
            y = jax.block_until_ready(
                basic_readout(x_padded, n_nodes, op, **cfg["kwargs"]))
            y_ref = _reference(x_padded, n_nodes, op)
            assert y.shape == (cfg["B"], cfg["F"]), (ci, op, y.shape)
            assert jnp.allclose(y, y_ref, atol=1e-4, rtol=1e-4), (ci, op)

    # TODO(synk): DGL graph objects / ragged node indexing have no in-kernel
    # equivalent; the wrapper expects the dense [B, NMAX, F] packing done host-side.
    print("KERNEL_OK")
</pallas_src>

<mosaic_0001>
module attributes {stable_mosaic.version = 11 : i64} {
  func.func @kernel(%arg0: i32, %arg1: i32, %arg2: memref<16x1xi32, #tpu.memory_space<vmem>>, %arg3: memref<16x16x128xf32, #tpu.memory_space<vmem>>, %arg4: memref<16x128xf32, #tpu.memory_space<vmem>>, %arg5: memref<16x128xf32, #tpu.memory_space<vmem>>) attributes {dimension_semantics = [#tpu.dimension_semantics<parallel>, #tpu.dimension_semantics<arbitrary>], iteration_bounds = array<i64: 1, 1>, scalar_prefetch = 0 : i64, scratch_operands = 1 : i64, tpu.core_type = #tpu.core_type<tc>, window_params = [{transform_indices = @transform_0, window_bounds = array<i64: 16, 1>}, {transform_indices = @transform_1, window_bounds = array<i64: 16, 16, 128>}, {transform_indices = @transform_2, window_bounds = array<i64: 16, 128>}]} {
    %c0 = arith.constant 0 : index
    %c0_0 = arith.constant 0 : index
    %c0_1 = arith.constant 0 : index
    %0 = vector.load %arg3[%c0, %c0_0, %c0_1] : memref<16x16x128xf32, #tpu.memory_space<vmem>>, vector<16x16x128xf32>
    %cst = arith.constant dense<0.000000e+00> : vector<16x128xf32>
    %1 = vector.multi_reduction <add>, %0, %cst [1] : vector<16x16x128xf32> to vector<16x128xf32>
    %c0_i32 = arith.constant 0 : i32
    %2 = arith.cmpi eq, %arg1, %c0_i32 : i32
    %3 = arith.extui %2 : i1 to i32
    %c0_i32_2 = arith.constant 0 : i32
    %4 = arith.cmpi ne, %3, %c0_i32_2 : i32
    scf.if %4 {
      %c0_7 = arith.constant 0 : index
      %c0_8 = arith.constant 0 : index
      %11 = vector.load %arg5[%c0_7, %c0_8] : memref<16x128xf32, #tpu.memory_space<vmem>>, vector<16x128xf32>
      tpu.vector_store %arg5[%c0_7, %c0_8], %1 {strides = array<i32>} : memref<16x128xf32, #tpu.memory_space<vmem>>, vector<16x128xf32>,
    } else {
    }
    %c0_i32_3 = arith.constant 0 : i32
    %5 = arith.cmpi sgt, %arg1, %c0_i32_3 : i32
    %6 = arith.extui %5 : i1 to i32
    %c0_i32_4 = arith.constant 0 : i32
    %7 = arith.cmpi ne, %6, %c0_i32_4 : i32
    scf.if %7 {
      %c0_7 = arith.constant 0 : index
      %c0_8 = arith.constant 0 : index
      %11 = vector.load %arg5[%c0_7, %c0_8] : memref<16x128xf32, #tpu.memory_space<vmem>>, vector<16x128xf32>
      %12 = arith.addf %11, %1 : vector<16x128xf32>
      %c0_9 = arith.constant 0 : index
      %c0_10 = arith.constant 0 : index
      %13 = vector.load %arg5[%c0_9, %c0_10] : memref<16x128xf32, #tpu.memory_space<vmem>>, vector<16x128xf32>
      tpu.vector_store %arg5[%c0_9, %c0_10], %12 {strides = array<i32>} : memref<16x128xf32, #tpu.memory_space<vmem>>, vector<16x128xf32>,
    } else {
    }
    %c0_i32_5 = arith.constant 0 : i32
    %8 = arith.cmpi eq, %arg1, %c0_i32_5 : i32
    %9 = arith.extui %8 : i1 to i32
    %c0_i32_6 = arith.constant 0 : i32
    %10 = arith.cmpi ne, %9, %c0_i32_6 : i32
    scf.if %10 {
      %c0_7 = arith.constant 0 : index
      %c0_8 = arith.constant 0 : index
      %11 = vector.load %arg5[%c0_7, %c0_8] : memref<16x128xf32, #tpu.memory_space<vmem>>, vector<16x128xf32>
      %c0_9 = arith.constant 0 : index
      %c0_10 = arith.constant 0 : index
      %12 = vector.load %arg4[%c0_9, %c0_10] : memref<16x128xf32, #tpu.memory_space<vmem>>, vector<16x128xf32>
      tpu.vector_store %arg4[%c0_9, %c0_10], %11 {strides = array<i32>} : memref<16x128xf32, #tpu.memory_space<vmem>>, vector<16x128xf32>,
    } else {
    }
    return
  }
  func.func @transform_0(%arg0: i32, %arg1: i32) -> (i32, i32) {
    %c0_i32 = arith.constant 0 : i32
    %c0_i32_0 = arith.constant 0 : i32
    return %arg0, %c0_i32 : i32, i32
  }
  func.func @transform_1(%arg0: i32, %arg1: i32) -> (i32, i32, i32) {
    %c0_i32 = arith.constant 0 : i32
    %c0_i32_0 = arith.constant 0 : i32
    return %arg0, %arg1, %c0_i32 : i32, i32, i32
  }
  func.func @transform_2(%arg0: i32, %arg1: i32) -> (i32, i32) {
    %c0_i32 = arith.constant 0 : i32
    %c0_i32_0 = arith.constant 0 : i32
    return %arg0, %c0_i32 : i32, i32
  }
}

</mosaic_0001>

<llo_original>
// kernel: tpu_custom_call.1
$region0: #{tpu_custom_call.1}
  #allocation0 [shape = 'u32[]', space=smem, size = 0x4, offset = 0x4, fixed_abs, tag = 'smem constant byte address 0x4 - core index']
  #allocation1 [shape = 'u32[144,128]{1,0:T(1,128)}', space=vmem, size = 0x12000, scoped, tag = 'internal scratch']
  #allocation2 [shape = 'f32[16,128]{1,0:T(8,128)}', space=vmem, size = 0x2000, scoped, tag = 'scratch operand']
  %s0 = inlined_call_operand.vmem [shape: s32[16,1], index: 0, kind: input, shape index: {}]
  %s1 = inlined_call_operand.hbm [shape: f32[16,16,128], index: 1, kind: input, shape index: {}]
  %s2 = inlined_call_operand.hbm [shape: f32[16,128], index: 2, kind: output, shape index: {}]
  %s3 = sld [smem:[#allocation0]]
  $region34: #{tpu_custom_call.1} parent=0
    _
  %s5 = ssub.s32 1, %s3
  %s6 = scalar_select 0, %s5, %s3
  $region1: #{tpu_custom_call.1} parent=0
    #allocation3 [shape = 'u8[131072]{0}', space=vmem, size = 0x20000, scoped, tag = 'input window, operand 1, single buffered']
    #allocation4 [shape = 's32[1]{0}', space=sflag, size = 0x4, scoped, tag = 'scoped memory for tpu_custom_call.1']
    #allocation5 [shape = 's32[1]{0}', space=sflag, size = 0x4, scoped, tag = 'scoped memory for tpu_custom_call.1']
    #allocation6 [shape = 'u8[8192]{0}', space=vmem, size = 0x2000, scoped, tag = 'output window, operand 0, single buffered']
    %7 = vsyncpa [#allocation4], 0
    %8 = vsyncpa [#allocation5], 0
    // Predicated region
    $region2: #{tpu_custom_call.1} parent=1 // pred_check
      _
    $region3: #{tpu_custom_call.1} parent=1 // pred_check_branch
      %10 = sbr.rel (0) target = $region5
    $region4: #{tpu_custom_call.1} parent=1 // pred_region
      _
    $region5: #{tpu_custom_call.1} parent=1 // pred_fallthru
      _
    // Predicated region
    $region6: #{tpu_custom_call.1} parent=1 // pred_check
      _
    $region7: #{tpu_custom_call.1} parent=1 // pred_check_branch
      %12 = sbr.rel (0) target = $region9
    $region8: #{tpu_custom_call.1} parent=1 // pred_region
      %s14 = ssub.s32 4096, 4096
      %15 = vsyncadd [#allocation4], %s14
      %s16 = sshll.u32 [#allocation3], 4
      %s17 = int_to_ptr.vmem [resolvable:$true] %s16
      %22 = dma.hbm_to_vmem [thread:$0]  %s1, 4096, %s17, [#allocation4], 128, 128, 8
    $region9: #{tpu_custom_call.1} parent=1 // pred_fallthru
      _
    // Predicated region
    $region10: #{tpu_custom_call.1} parent=1 // pred_check
      _
    $region11: #{tpu_custom_call.1} parent=1 // pred_check_branch
      %24 = sbr.rel (0) target = $region13
    $region12: #{tpu_custom_call.1} parent=1 // pred_region
      %25 = dma.done [#allocation4], 4096
    $region13: #{tpu_custom_call.1} parent=1 // pred_fallthru
      _
    %v26 = vld [vmem:[#allocation3] sm:$0xff]
    %v27 = vld [vmem:[#allocation3 + $0x8] sm:$0xff]
    %v28 = vld [vmem:[#allocation3 + $0x10] sm:$0xff]
    %v29 = vld [vmem:[#allocation3 + $0x18] sm:$0xff]
    %v30 = vld [vmem:[#allocation3 + $0x20] sm:$0xff]
    %v31 = vld [vmem:[#allocation3 + $0x28] sm:$0xff]
    %v32 = vld [vmem:[#allocation3 + $0x30] sm:$0xff]
    %v33 = vld [vmem:[#allocation3 + $0x38] sm:$0xff]
    %v34 = vld [vmem:[#allocation3 + $0x40] sm:$0xff]
    %v35 = vld [vmem:[#allocation3 + $0x48] sm:$0xff]
    %v36 = vld [vmem:[#allocation3 + $0x50] sm:$0xff]
    %v37 = vld [vmem:[#allocation3 + $0x58] sm:$0xff]
    %v38 = vld [vmem:[#allocation3 + $0x60] sm:$0xff]
    %v39 = vld [vmem:[#allocation3 + $0x68] sm:$0xff]
    %v40 = vld [vmem:[#allocation3 + $0x70] sm:$0xff]
    %v41 = vld [vmem:[#allocation3 + $0x78] sm:$0xff]
    %v42 = vld [vmem:[#allocation3 + $0x80] sm:$0xff]
    %v43 = vld [vmem:[#allocation3 + $0x88] sm:$0xff]
    %v44 = vld [vmem:[#allocation3 + $0x90] sm:$0xff]
    %v45 = vld [vmem:[#allocation3 + $0x98] sm:$0xff]
    %v46 = vld [vmem:[#allocation3 + $0xa0] sm:$0xff]
    %v47 = vld [vmem:[#allocation3 + $0xa8] sm:$0xff]
    %v48 = vld [vmem:[#allocation3 + $0xb0] sm:$0xff]
    %v49 = vld [vmem:[#allocation3 + $0xb8] sm:$0xff]
    %v50 = vld [vmem:[#allocation3 + $0xc0] sm:$0xff]
    %v51 = vld [vmem:[#allocation3 + $0xc8] sm:$0xff]
    %v52 = vld [vmem:[#allocation3 + $0xd0] sm:$0xff]
    %v53 = vld [vmem:[#allocation3 + $0xd8] sm:$0xff]
    %v54 = vld [vmem:[#allocation3 + $0xe0] sm:$0xff]
    %v55 = vld [vmem:[#allocation3 + $0xe8] sm:$0xff]
    %v56 = vld [vmem:[#allocation3 + $0xf0] sm:$0xff]
    %v57 = vld [vmem:[#allocation3 + $0xf8] sm:$0xff]
    %v58 = vadd.f32 %v26, %v27
    %v59 = vrot.slane %v58, 4
    %v60 = vadd.f32 %v58, %v59
    %v61 = vrot.slane %v60, 2
    %v62 = vadd.f32 %v60, %v61
    %v63 = vrot.slane %v62, 1
    %v64 = vadd.f32 %v62, %v63
    %v65 = vadd.f32 %v28, %v29
    %v66 = vrot.slane %v65, 4
    %v67 = vadd.f32 %v65, %v66
    %v68 = vrot.slane %v67, 2
    %v69 = vadd.f32 %v67, %v68
    %v70 = vrot.slane %v69, 1
    %v71 = vadd.f32 %v69, %v70
    %v72 = vadd.f32 %v30, %v31
    %v73 = vrot.slane %v72, 4
    %v74 = vadd.f32 %v72, %v73
    %v75 = vrot.slane %v74, 2
    %v76 = vadd.f32 %v74, %v75
    %v77 = vrot.slane %v76, 1
    %v78 = vadd.f32 %v76, %v77
    %v79 = vadd.f32 %v32, %v33
    %v80 = vrot.slane %v79, 4
    %v81 = vadd.f32 %v79, %v80
    %v82 = vrot.slane %v81, 2
    %v83 = vadd.f32 %v81, %v82
    %v84 = vrot.slane %v83, 1
    %v85 = vadd.f32 %v83, %v84
    %v86 = vadd.f32 %v34, %v35
    %v87 = vrot.slane %v86, 4
    %v88 = vadd.f32 %v86, %v87
    %v89 = vrot.slane %v88, 2
    %v90 = vadd.f32 %v88, %v89
    %v91 = vrot.slane %v90, 1
    %v92 = vadd.f32 %v90, %v91
    %v93 = vadd.f32 %v36, %v37
    %v94 = vrot.slane %v93, 4
    %v95 = vadd.f32 %v93, %v94
    %v96 = vrot.slane %v95, 2
    %v97 = vadd.f32 %v95, %v96
    %v98 = vrot.slane %v97, 1
    %v99 = vadd.f32 %v97, %v98
    %v100 = vadd.f32 %v38, %v39
    %v101 = vrot.slane %v100, 4
    %v102 = vadd.f32 %v100, %v101
    %v103 = vrot.slane %v102, 2
    %v104 = vadd.f32 %v102, %v103
    %v105 = vrot.slane %v104, 1
    %v106 = vadd.f32 %v104, %v105
    %v107 = vadd.f32 %v40, %v41
    %v108 = vrot.slane %v107, 4
    %v109 = vadd.f32 %v107, %v108
    %v110 = vrot.slane %v109, 2
    %v111 = vadd.f32 %v109, %v110
    %v112 = vrot.slane %v111, 1
    %v113 = vadd.f32 %v111, %v112
    %v114 = vadd.f32 %v42, %v43
    %v115 = vrot.slane %v114, 4
    %v116 = vadd.f32 %v114, %v115
    %v117 = vrot.slane %v116, 2
    %v118 = vadd.f32 %v116, %v117
    %v119 = vrot.slane %v118, 1
    %v120 = vadd.f32 %v118, %v119
    %v121 = vadd.f32 %v44, %v45
    %v122 = vrot.slane %v121, 4
    %v123 = vadd.f32 %v121, %v122
    %v124 = vrot.slane %v123, 2
    %v125 = vadd.f32 %v123, %v124
    %v126 = vrot.slane %v125, 1
    %v127 = vadd.f32 %v125, %v126
    %v128 = vadd.f32 %v46, %v47
    %v129 = vrot.slane %v128, 4
    %v130 = vadd.f32 %v128, %v129
    %v131 = vrot.slane %v130, 2
    %v132 = vadd.f32 %v130, %v131
    %v133 = vrot.slane %v132, 1
    %v134 = vadd.f32 %v132, %v133
    %v135 = vadd.f32 %v48, %v49
    %v136 = vrot.slane %v135, 4
    %v137 = vadd.f32 %v135, %v136
    %v138 = vrot.slane %v137, 2
    %v139 = vadd.f32 %v137, %v138
    %v140 = vrot.slane %v139, 1
    %v141 = vadd.f32 %v139, %v140
    %v142 = vadd.f32 %v50, %v51
    %v143 = vrot.slane %v142, 4
    %v144 = vadd.f32 %v142, %v143
    %v145 = vrot.slane %v144, 2
    %v146 = vadd.f32 %v144, %v145
    %v147 = vrot.slane %v146, 1
    %v148 = vadd.f32 %v146, %v147
    %v149 = vadd.f32 %v52, %v53
    %v150 = vrot.slane %v149, 4
    %v151 = vadd.f32 %v149, %v150
    %v152 = vrot.slane %v151, 2
    %v153 = vadd.f32 %v151, %v152
    %v154 = vrot.slane %v153, 1
    %v155 = vadd.f32 %v153, %v154
    %v156 = vadd.f32 %v54, %v55
    %v157 = vrot.slane %v156, 4
    %v158 = vadd.f32 %v156, %v157
    %v159 = vrot.slane %v158, 2
    %v160 = vadd.f32 %v158, %v159
    %v161 = vrot.slane %v160, 1
    %v162 = vadd.f32 %v160, %v161
    %v163 = vadd.f32 %v56, %v57
    %v164 = vrot.slane %v163, 4
    %v165 = vadd.f32 %v163, %v164
    %v166 = vrot.slane %v165, 2
    %v167 = vadd.f32 %v165, %v166
    %v168 = vrot.slane %v167, 1
    %v169 = vadd.f32 %v167, %v168
    %p170 = scmp.eq.s32.totalorder 0, 0
    // Predicated region
    $region14: #{tpu_custom_call.1} parent=1 // pred_check
      %p171 = pneg %p170
    $region15: #{tpu_custom_call.1} parent=1 // pred_check_branch
      %173 = sbr.rel (%p171) target = $region17
    $region16: #{tpu_custom_call.1} parent=1 // pred_region
      %vm190 = vcmask 1041409
      %v191 = vsel %vm190, %v71, %v64
      %vm192 = vcmask 1042434
      %v193 = vsel %vm192, %v78, %v191
      %vm194 = vcmask 1043459
      %v195 = vsel %vm194, %v85, %v193
      %vm196 = vcmask 1044484
      %v197 = vsel %vm196, %v92, %v195
      %vm198 = vcmask 1045509
      %v199 = vsel %vm198, %v99, %v197
      %vm200 = vcmask 1046534
      %v201 = vsel %vm200, %v106, %v199
      %vm202 = vcmask 1047559
      %v203 = vsel %vm202, %v113, %v201
      %v204 = vsel %vm190, %v127, %v120
      %v205 = vsel %vm192, %v134, %v204
      %v206 = vsel %vm194, %v141, %v205
      %v207 = vsel %vm196, %v148, %v206
      %v208 = vsel %vm198, %v155, %v207
      %v209 = vsel %vm200, %v162, %v208
      %v210 = vsel %vm202, %v169, %v209
      %213 = vst [vmem:[#allocation2] sm:$0xff] %v203
      %214 = vst [vmem:[#allocation2 + $0x8] sm:$0xff] %v210
    $region17: #{tpu_custom_call.1} parent=1 // pred_fallthru
      _
    %p215 = scmp.gt.s32.totalorder 0, 0
    // Predicated region
    $region18: #{tpu_custom_call.1} parent=1 // pred_check
      %p216 = pneg %p215
    $region19: #{tpu_custom_call.1} parent=1 // pred_check_branch
      %218 = sbr.rel (%p216) target = $region21
    $region20: #{tpu_custom_call.1} parent=1 // pred_region
      %v219 = vld [vmem:[#allocation2] sm:$0xff]
      %v220 = vld [vmem:[#allocation2 + $0x8] sm:$0xff]
      %vm237 = vcmask 1041409
      %v238 = vsel %vm237, %v71, %v64
      %vm239 = vcmask 1042434
      %v240 = vsel %vm239, %v78, %v238
      %vm241 = vcmask 1043459
      %v242 = vsel %vm241, %v85, %v240
      %vm243 = vcmask 1044484
      %v244 = vsel %vm243, %v92, %v242
      %vm245 = vcmask 1045509
      %v246 = vsel %vm245, %v99, %v244
      %vm247 = vcmask 1046534
      %v248 = vsel %vm247, %v106, %v246
      %vm249 = vcmask 1047559
      %v250 = vsel %vm249, %v113, %v248
      %v251 = vsel %vm237, %v127, %v120
      %v252 = vsel %vm239, %v134, %v251
      %v253 = vsel %vm241, %v141, %v252
      %v254 = vsel %vm243, %v148, %v253
      %v255 = vsel %vm245, %v155, %v254
      %v256 = vsel %vm247, %v162, %v255
      %v257 = vsel %vm249, %v169, %v256
      %v260 = vadd.f32 %v219, %v250
      %v261 = vadd.f32 %v220, %v257
      %262 = vst [vmem:[#allocation2] sm:$0xff] %v260
      %263 = vst [vmem:[#allocation2 + $0x8] sm:$0xff] %v261
    $region21: #{tpu_custom_call.1} parent=1 // pred_fallthru
      _
    // Predicated region
    $region22: #{tpu_custom_call.1} parent=1 // pred_check
      %p264 = pneg %p170
    $region23: #{tpu_custom_call.1} parent=1 // pred_check_branch
      %266 = sbr.rel (%p264) target = $region25
    $region24: #{tpu_custom_call.1} parent=1 // pred_region
      %v267 = vld [vmem:[#allocation2] sm:$0xff]
      %v268 = vld [vmem:[#allocation2 + $0x8] sm:$0xff]
      %269 = vst [vmem:[#allocation6] sm:$0xff] %v267
      %270 = vst [vmem:[#allocation6 + $0x8] sm:$0xff] %v268
    $region25: #{tpu_custom_call.1} parent=1 // pred_fallthru
      _
    // Predicated region
    $region26: #{tpu_custom_call.1} parent=1 // pred_check
      _
    $region27: #{tpu_custom_call.1} parent=1 // pred_check_branch
      %272 = sbr.rel (0) target = $region29
    $region28: #{tpu_custom_call.1} parent=1 // pred_region
      %s274 = ssub.s32 256, 256
      %275 = vsyncadd [#allocation5], %s274
      %s276 = sshll.u32 [#allocation6], 4
      %s277 = int_to_ptr.vmem [resolvable:$true] %s276
      %282 = dma.vmem_to_hbm [thread:$0]  %s277, 256, %s2, [#allocation5], 128, 128, 8
    $region29: #{tpu_custom_call.1} parent=1 // pred_fallthru
      _
    // Predicated region
    $region30: #{tpu_custom_call.1} parent=1 // pred_check
      _
    $region31: #{tpu_custom_call.1} parent=1 // pred_check_branch
      %284 = sbr.rel (0) target = $region33
    $region32: #{tpu_custom_call.1} parent=1 // pred_region
      %285 = dma.done [#allocation5], 256
    $region33: #{tpu_custom_call.1} parent=1 // pred_fallthru
      _
    %286 = vsyncpa [#allocation4], 1
    %287 = vsyncpa [#allocation5], 1

</llo_original>
